<compile_context>
chip_gen: v6e
topology: v6e:2x2x1
jax: 0.10.0
libtpu: 0.0.40
codegen_flags: <defaults>
</compile_context>

<pallas_src>
import jax
import jax.numpy as jnp
from jax import lax
from jax.experimental import pallas as pl
from jax.experimental.pallas import tpu as pltpu

LANE = 128  # TPU lane width


def _make_encoder_kernel(n_layers, fan_outs, max_fan_out):
    """Builds the fused MLP kernel for one lane-dense batch tile.

    Ref layout:
      x_ref : [Bt, in_features]               (batch-major, as stored in HBM)
      w_k   : [fan_out_k, fan_in_k]           (native PyTorch Linear layout)
      b_ref : [n_layers * max_fan_out, 1]     (bias of layer k at rows
                                               [k*max_fan_out, k*max_fan_out+fan_out_k))
      o_ref : [latent_features, Bt]
    """

    def kernel(*refs):
        x_ref = refs[0]
        w_refs = refs[1:1 + n_layers]
        b_ref = refs[1 + n_layers]
        o_ref = refs[2 + n_layers]

        def bias(k):
            off = k * max_fan_out
            return b_ref[off:off + fan_outs[k], :]          # [fan_out_k, 1]

        # Layer 0: contract the feature axes of W0 [W, in] and x [Bt, in]
        # -> h [W, Bt] with batch on the lane axis, no wrapper transpose.
        h = lax.dot_general(w_refs[0][...], x_ref[...],
                            (((1,), (1,)), ((), ())),
                            preferred_element_type=jnp.float32)
        h = jnp.maximum(h + bias(0), 0.0)

        # Hidden layers: Linear(W, W) + ReLU.
        for k in range(1, n_layers - 1):
            h = jnp.dot(w_refs[k][...], h, preferred_element_type=jnp.float32)
            h = jnp.maximum(h + bias(k), 0.0)

        # Final layer: Linear(W, latent) + Tanh.
        h = jnp.dot(w_refs[-1][...], h, preferred_element_type=jnp.float32)
        o_ref[...] = jnp.tanh(h + bias(n_layers - 1))

    return kernel


def pack_encoder_params(params):
    """One-time packing of PyTorch-layout params for the kernel.

    params: list of (W [fan_out, fan_in], b [fan_out] or [fan_out, 1]).
    Returns (weights, bias_pack) with bias_pack [n_layers * max_fan_out, 1].
    Call once at model-build time so the per-call wrapper does no parameter
    reshuffling (this encoder is launch/DMA-overhead bound).
    """
    weights = [jnp.asarray(w, jnp.float32) for w, _ in params]
    max_fo = max(w.shape[0] for w in weights)
    cols = []
    for _, b in params:
        b = jnp.asarray(b, jnp.float32).reshape(-1, 1)
        cols.append(jnp.pad(b, ((0, max_fo - b.shape[0]), (0, 0))))
    bias_pack = jnp.concatenate(cols, axis=0)                # [n_layers*max_fo, 1]
    return weights, bias_pack


def encoder_forward(x, weights, bias_pack, *, batch_tile=1024,
                    transpose_output=True):
    """x: [B, in_features]; weights/bias_pack from pack_encoder_params.

    Returns [B, latent_features] (or [latent_features, B] if
    transpose_output=False, for latent-major consumers inside an ODE solve).
    """
    B, in_features = x.shape
    n_layers = len(weights)
    latent_features = weights[-1].shape[0]
    max_fan_out = bias_pack.shape[0] // n_layers
    fan_outs = tuple(w.shape[0] for w in weights)

    # --- batch tiling --------------------------------------------------------
    # Batch is the lane axis; pad it to a 128 multiple.  Cap the tile at
    # b_pad // 2 (min 128) so there are always >= 2 grid steps when the batch
    # allows: with dimension_semantics=("parallel",) v7x's two TensorCores
    # each take a share (no effect on single-core v5e/v6e).  batch_tile=1024
    # keeps per-step overhead amortized for large B; VMEM stays < 2 MiB.
    b_pad = max(LANE, pl.cdiv(B, LANE) * LANE)
    tile_cap = b_pad // 2 if b_pad >= 2 * LANE else b_pad
    tile = max(LANE, (min(batch_tile, tile_cap) // LANE) * LANE)
    b_pad = pl.cdiv(b_pad, tile) * tile
    grid = (b_pad // tile,)

    # Single fused pad on the batch axis (skipped entirely when unnecessary).
    x = x.astype(jnp.float32)
    x_in = x if b_pad == B else jnp.pad(x, ((0, b_pad - B), (0, 0)))

    x_spec = pl.BlockSpec((tile, in_features), lambda i: (i, 0))
    out_spec = pl.BlockSpec((latent_features, tile), lambda i: (0, i))

    def full_spec(arr):
        # Whole array, same block every grid step (weights / packed biases).
        return pl.BlockSpec(arr.shape, lambda i: (0, 0))

    in_specs = [x_spec] + [full_spec(w) for w in weights] + [full_spec(bias_pack)]

    # Advisory cost estimate so XLA schedules surrounding ops sensibly.
    flops = 2 * B * sum(w.shape[0] * w.shape[1] for w in weights)
    bytes_accessed = 4 * (x.size + sum(w.size for w in weights)
                          + bias_pack.size + B * latent_features)
    cost = pl.CostEstimate(flops=flops,
                           transcendentals=B * latent_features,
                           bytes_accessed=bytes_accessed)

    kernel = _make_encoder_kernel(n_layers, fan_outs, max_fan_out)

    out_t = pl.pallas_call(
        kernel,
        out_shape=jax.ShapeDtypeStruct((latent_features, b_pad), jnp.float32),
        grid_spec=pltpu.PrefetchScalarGridSpec(
            num_scalar_prefetch=0,
            grid=grid,
            in_specs=in_specs,
            out_specs=out_spec,
        ),
        compiler_params=pltpu.CompilerParams(
            dimension_semantics=("parallel",)),
        cost_estimate=cost,
    )(x_in, *weights, bias_pack)

    out = out_t[:, :B]                    # [latent, B]
    return out.T if transpose_output else out


def init_params(key, in_features, latent_features=5, coder_layers=3,
                coder_width=32):
    """PyTorch-Linear-style init: U(-1/sqrt(fan_in), 1/sqrt(fan_in)).

    Weights in native PyTorch layout [fan_out, fan_in]; biases [fan_out].
    """
    dims = [in_features] + [coder_width] * coder_layers + [latent_features]
    params = []
    for fan_in, fan_out in zip(dims[:-1], dims[1:]):
        key, kw, kb = jax.random.split(key, 3)
        bound = 1.0 / jnp.sqrt(fan_in)
        w = jax.random.uniform(kw, (fan_out, fan_in), jnp.float32, -bound, bound)
        b = jax.random.uniform(kb, (fan_out,), jnp.float32, -bound, bound)
        params.append((w, b))
    return params


def encoder_reference(x, params):
    h = x
    for (w, b) in params[:-1]:
        h = jnp.maximum(h @ w.T + b, 0.0)
    w, b = params[-1]
    return jnp.tanh(h @ w.T + b)


if __name__ == "__main__":
    key = jax.random.PRNGKey(0)
    in_features = 16
    latent_features = 5
    coder_layers = 3
    coder_width = 32
    batch = 200  # deliberately NOT a multiple of 128 to exercise padding path

    key, kx = jax.random.split(key)
    x = jax.random.normal(kx, (batch, in_features), jnp.float32)
    params = init_params(key, in_features, latent_features, coder_layers,
                         coder_width)

    weights, bias_pack = pack_encoder_params(params)   # one-time packing
    out = encoder_forward(x, weights, bias_pack)
    out = jax.block_until_ready(out)

    ref = encoder_reference(x, params)
    assert out.shape == (batch, latent_features)
    assert jnp.allclose(out, ref, atol=1e-5, rtol=1e-5), "mismatch vs JAX reference"

    print("KERNEL_OK")
</pallas_src>

<mosaic_0001>
module attributes {stable_mosaic.version = 11 : i64} {
  func.func @kernel(%arg0: i32, %arg1: memref<128x16xf32, #tpu.memory_space<vmem>>, %arg2: memref<32x16xf32, #tpu.memory_space<vmem>>, %arg3: memref<32x32xf32, #tpu.memory_space<vmem>>, %arg4: memref<32x32xf32, #tpu.memory_space<vmem>>, %arg5: memref<5x32xf32, #tpu.memory_space<vmem>>, %arg6: memref<128x1xf32, #tpu.memory_space<vmem>>, %arg7: memref<5x128xf32, #tpu.memory_space<vmem>>) attributes {dimension_semantics = [#tpu.dimension_semantics<parallel>], iteration_bounds = array<i64: 2>, scalar_prefetch = 0 : i64, scratch_operands = 0 : i64, tpu.core_type = #tpu.core_type<tc>, window_params = [{transform_indices = @transform_0, window_bounds = array<i64: 128, 16>}, {pipeline_mode = #tpu.pipeline_mode<synchronous>, transform_indices = @transform_1, window_bounds = array<i64: 32, 16>}, {pipeline_mode = #tpu.pipeline_mode<synchronous>, transform_indices = @transform_2, window_bounds = array<i64: 32, 32>}, {pipeline_mode = #tpu.pipeline_mode<synchronous>, transform_indices = @transform_3, window_bounds = array<i64: 32, 32>}, {pipeline_mode = #tpu.pipeline_mode<synchronous>, transform_indices = @transform_4, window_bounds = array<i64: 5, 32>}, {pipeline_mode = #tpu.pipeline_mode<synchronous>, transform_indices = @transform_5, window_bounds = array<i64: 128, 1>}, {transform_indices = @transform_6, window_bounds = array<i64: 5, 128>}]} {
    %c0 = arith.constant 0 : index
    %c0_0 = arith.constant 0 : index
    %0 = vector.load %arg2[%c0, %c0_0] : memref<32x16xf32, #tpu.memory_space<vmem>>, vector<32x16xf32>
    %c0_1 = arith.constant 0 : index
    %c0_2 = arith.constant 0 : index
    %1 = vector.load %arg1[%c0_1, %c0_2] : memref<128x16xf32, #tpu.memory_space<vmem>>, vector<128x16xf32>
    %cst = arith.constant dense<0.000000e+00> : vector<32x128xf32>
    %2 = tpu.matmul %0, %1, %cst {dimension_numbers = #tpu.dot_dimension_numbers<[1], [1], [0], [0], [0, 0, 1, 0], [], []>} : vector<32x16xf32>, vector<128x16xf32>, vector<32x128xf32> -> vector<32x128xf32>
    %c0_3 = arith.constant 0 : index
    %c0_4 = arith.constant 0 : index
    %3 = vector.load %arg6[%c0_3, %c0_4] : memref<128x1xf32, #tpu.memory_space<vmem>>, vector<32x1xf32>
    %4 = vector.broadcast %3 : vector<32x1xf32> to vector<32x128xf32>
    %5 = arith.addf %2, %4 : vector<32x128xf32>
    %cst_5 = arith.constant 0.000000e+00 : f32
    %6 = vector.broadcast %cst_5 : f32 to vector<32x128xf32>
    %7 = arith.maximumf %5, %6 : vector<32x128xf32>
    %c0_6 = arith.constant 0 : index
    %c0_7 = arith.constant 0 : index
    %8 = vector.load %arg3[%c0_6, %c0_7] : memref<32x32xf32, #tpu.memory_space<vmem>>, vector<32x32xf32>
    %cst_8 = arith.constant dense<0.000000e+00> : vector<32x128xf32>
    %9 = tpu.matmul %8, %7, %cst_8 {dimension_numbers = #tpu.dot_dimension_numbers<[1], [0], [0], [1], [0, 0, 1, 1], [], []>} : vector<32x32xf32>, vector<32x128xf32>, vector<32x128xf32> -> vector<32x128xf32>
    %c32 = arith.constant 32 : index
    %c0_9 = arith.constant 0 : index
    %10 = vector.load %arg6[%c32, %c0_9] : memref<128x1xf32, #tpu.memory_space<vmem>>, vector<32x1xf32>
    %11 = vector.broadcast %10 : vector<32x1xf32> to vector<32x128xf32>
    %12 = arith.addf %9, %11 : vector<32x128xf32>
    %cst_10 = arith.constant 0.000000e+00 : f32
    %13 = vector.broadcast %cst_10 : f32 to vector<32x128xf32>
    %14 = arith.maximumf %12, %13 : vector<32x128xf32>
    %c0_11 = arith.constant 0 : index
    %c0_12 = arith.constant 0 : index
    %15 = vector.load %arg4[%c0_11, %c0_12] : memref<32x32xf32, #tpu.memory_space<vmem>>, vector<32x32xf32>
    %cst_13 = arith.constant dense<0.000000e+00> : vector<32x128xf32>
    %16 = tpu.matmul %15, %14, %cst_13 {dimension_numbers = #tpu.dot_dimension_numbers<[1], [0], [0], [1], [0, 0, 1, 1], [], []>} : vector<32x32xf32>, vector<32x128xf32>, vector<32x128xf32> -> vector<32x128xf32>
    %c64 = arith.constant 64 : index
    %c0_14 = arith.constant 0 : index
    %17 = vector.load %arg6[%c64, %c0_14] : memref<128x1xf32, #tpu.memory_space<vmem>>, vector<32x1xf32>
    %18 = vector.broadcast %17 : vector<32x1xf32> to vector<32x128xf32>
    %19 = arith.addf %16, %18 : vector<32x128xf32>
    %cst_15 = arith.constant 0.000000e+00 : f32
    %20 = vector.broadcast %cst_15 : f32 to vector<32x128xf32>
    %21 = arith.maximumf %19, %20 : vector<32x128xf32>
    %c0_16 = arith.constant 0 : index
    %c0_17 = arith.constant 0 : index
    %22 = vector.load %arg5[%c0_16, %c0_17] : memref<5x32xf32, #tpu.memory_space<vmem>>, vector<5x32xf32>
    %cst_18 = arith.constant dense<0.000000e+00> : vector<5x128xf32>
    %23 = tpu.matmul %22, %21, %cst_18 {dimension_numbers = #tpu.dot_dimension_numbers<[1], [0], [0], [1], [0, 0, 1, 1], [], []>} : vector<5x32xf32>, vector<32x128xf32>, vector<5x128xf32> -> vector<5x128xf32>
    %c96 = arith.constant 96 : index
    %c0_19 = arith.constant 0 : index
    %24 = vector.load %arg6[%c96, %c0_19] : memref<128x1xf32, #tpu.memory_space<vmem>>, vector<5x1xf32>
    %25 = vector.broadcast %24 : vector<5x1xf32> to vector<5x128xf32>
    %26 = arith.addf %23, %25 : vector<5x128xf32>
    %27 = math.tanh %26 : vector<5x128xf32>
    %c0_20 = arith.constant 0 : index
    %c0_21 = arith.constant 0 : index
    %28 = vector.load %arg7[%c0_20, %c0_21] : memref<5x128xf32, #tpu.memory_space<vmem>>, vector<5x128xf32>
    tpu.vector_store %arg7[%c0_20, %c0_21], %27 {strides = array<i32>} : memref<5x128xf32, #tpu.memory_space<vmem>>, vector<5x128xf32>,
    return
  }
  func.func @transform_0(%arg0: i32) -> (i32, i32) {
    %c0_i32 = arith.constant 0 : i32
    %c0_i32_0 = arith.constant 0 : i32
    return %arg0, %c0_i32 : i32, i32
  }
  func.func @transform_1(%arg0: i32) -> (i32, i32) {
    %c0_i32 = arith.constant 0 : i32
    %c0_i32_0 = arith.constant 0 : i32
    %c0_i32_1 = arith.constant 0 : i32
    return %c0_i32, %c0_i32_0 : i32, i32
  }
  func.func @transform_2(%arg0: i32) -> (i32, i32) {
    %c0_i32 = arith.constant 0 : i32
    %c0_i32_0 = arith.constant 0 : i32
    %c0_i32_1 = arith.constant 0 : i32
    return %c0_i32, %c0_i32_0 : i32, i32
  }
  func.func @transform_3(%arg0: i32) -> (i32, i32) {
    %c0_i32 = arith.constant 0 : i32
    %c0_i32_0 = arith.constant 0 : i32
    %c0_i32_1 = arith.constant 0 : i32
    return %c0_i32, %c0_i32_0 : i32, i32
  }
  func.func @transform_4(%arg0: i32) -> (i32, i32) {
    %c0_i32 = arith.constant 0 : i32
    %c0_i32_0 = arith.constant 0 : i32
    %c0_i32_1 = arith.constant 0 : i32
    return %c0_i32, %c0_i32_0 : i32, i32
  }
  func.func @transform_5(%arg0: i32) -> (i32, i32) {
    %c0_i32 = arith.constant 0 : i32
    %c0_i32_0 = arith.constant 0 : i32
    %c0_i32_1 = arith.constant 0 : i32
    return %c0_i32, %c0_i32_0 : i32, i32
  }
  func.func @transform_6(%arg0: i32) -> (i32, i32) {
    %c0_i32 = arith.constant 0 : i32
    %c0_i32_0 = arith.constant 0 : i32
    return %c0_i32, %arg0 : i32, i32
  }
}

</mosaic_0001>

<llo_original>
// kernel: tpu_custom_call.1
$region0: #{tpu_custom_call.1}
  #allocation0 [shape = 'u32[]', space=smem, size = 0x4, offset = 0x4, fixed_abs, tag = 'smem constant byte address 0x4 - core index']
  #allocation1 [shape = 'u32[144,128]{1,0:T(1,128)}', space=vmem, size = 0x12000, scoped, tag = 'internal scratch']
  %s0 = inlined_call_operand.vmem [shape: f32[256,16], index: 0, kind: input, shape index: {}]
  %s1 = inlined_call_operand.vmem [shape: f32[32,16], index: 1, kind: input, shape index: {}]
  %s2 = inlined_call_operand.vmem [shape: f32[32,32], index: 2, kind: input, shape index: {}]
  %s3 = inlined_call_operand.vmem [shape: f32[32,32], index: 3, kind: input, shape index: {}]
  %s4 = inlined_call_operand.vmem [shape: f32[5,32], index: 4, kind: input, shape index: {}]
  %s5 = inlined_call_operand.vmem [shape: f32[128,1], index: 5, kind: input, shape index: {}]
  %s6 = inlined_call_operand.hbm [shape: f32[5,256], index: 6, kind: output, shape index: {}]
  %s7 = sld [smem:[#allocation0]]
  $region57: #{tpu_custom_call.1} parent=0
    _
  %s9 = ssub.s32 1, %s7
  %s10 = scalar_select 0, %s9, %s7
  $region1: #{tpu_custom_call.1} parent=0
    #allocation2 [shape = 'u8[8192]{0}', space=vmem, size = 0x2000, scoped, tag = 'output window, operand 0']
    #allocation3 [shape = 's32[2]{0}', space=sflag, size = 0x8, scoped, tag = 'scoped memory for tpu_custom_call.1']
    %11 = vsyncpa [#allocation3], 0
    %s12 = scalar_lea.sflag [#allocation3], 1
    %13 = vsyncpa %s12, 0
    loop: start=0, step=1, limit=4
    $region2: #{tpu_custom_call.1} parent=1 // loop_pre_header
      _
    $region3: #{tpu_custom_call.1} parent=1 // loop_header
      %s15 = sphi 0, %s19
      %p16 = scmp.ge.s32.totalorder %s15, 4
      %s25 = sphi 0, %s27
      %s28 = sphi 0, %s25
      %s29 = sphi 0, %s28
      %s45 = sphi 0, %s29
      %s49 = sphi 0, %s49
      %s51 = sphi 0, %s49
      %s52 = sphi 0, %s51
      %s66 = sphi 0, %s52
      %s70 = sphi 0, %s70
      %s72 = sphi 0, %s70
      %s73 = sphi 0, %s72
      %s87 = sphi 0, %s73
      %s91 = sphi 0, %s91
      %s93 = sphi 0, %s91
      %s94 = sphi 0, %s93
      %s108 = sphi 0, %s94
      %s112 = sphi 0, %s112
      %s114 = sphi 0, %s112
      %s115 = sphi 0, %s114
      %s129 = sphi 0, %s115
      %s133 = sphi 0, %s133
      %s135 = sphi 0, %s133
      %s136 = sphi 0, %s135
      %s150 = sphi 0, %s136
      %s156 = sphi 0, %s158
      %s159 = sphi 0, %s156
      %s160 = sphi 0, %s159
      %s176 = sphi 0, %s160
    $region4: #{tpu_custom_call.1} parent=1 // loop_header_branch
      %18 = sbr.rel (%p16) target = $region8
    $region5: #{tpu_custom_call.1} parent=1 // loop_body
      %s20 = ssub.s32 %s15, 1
      %s21 = ssub.s32 %s15, 2
      %s22 = sadd.s32 %s15, 1
      %s23 = ssub.s32 %s15, %s22
      %p24 = scmp.eq.s32.totalorder %s23, 0
      %s26 = sadd.s32 %s25, 1
      %s27 = scalar_select %p24, %s25, %s26
      %p30 = pneg %p24
      %p31 = scmp.eq.s32.totalorder %s15, 1
      %p32 = por %p30, %p31
      %p33 = scmp.ne.s32.totalorder %s25, %s28
      %p34 = scmp.eq.s32.totalorder %s15, 0
      %p35 = por %p33, %p34
      %p36 = scmp.ne.s32.totalorder %s25, %s28
      %p37 = scmp.eq.s32.totalorder %s20, 1
      %p38 = por %p36, %p37
      %p39 = scmp.ne.s32.totalorder %s28, %s29
      %p40 = scmp.eq.s32.totalorder %s20, 0
      %p41 = por %p39, %p40
      %p42 = scmp.ne.s32.totalorder %s28, %s29
      %p43 = scmp.eq.s32.totalorder %s21, 1
      %p44 = por %p42, %p43
      %p46 = scmp.ne.s32.totalorder %s29, %s45
      %p47 = scmp.eq.s32.totalorder %s21, 0
      %p48 = por %p46, %p47
      %s50 = sadd.s32 %s49, 1
      %p53 = scmp.eq.s32.totalorder %s15, 1
      %p54 = scmp.ne.s32.totalorder %s49, %s51
      %p55 = scmp.eq.s32.totalorder %s15, 0
      %p56 = por %p54, %p55
      %p57 = scmp.ne.s32.totalorder %s49, %s51
      %p58 = scmp.eq.s32.totalorder %s20, 1
      %p59 = por %p57, %p58
      %p60 = scmp.ne.s32.totalorder %s51, %s52
      %p61 = scmp.eq.s32.totalorder %s20, 0
      %p62 = por %p60, %p61
      %p63 = scmp.ne.s32.totalorder %s51, %s52
      %p64 = scmp.eq.s32.totalorder %s21, 1
      %p65 = por %p63, %p64
      %p67 = scmp.ne.s32.totalorder %s52, %s66
      %p68 = scmp.eq.s32.totalorder %s21, 0
      %p69 = por %p67, %p68
      %s71 = sadd.s32 %s70, 1
      %p74 = scmp.eq.s32.totalorder %s15, 1
      %p75 = scmp.ne.s32.totalorder %s70, %s72
      %p76 = scmp.eq.s32.totalorder %s15, 0
      %p77 = por %p75, %p76
      %p78 = scmp.ne.s32.totalorder %s70, %s72
      %p79 = scmp.eq.s32.totalorder %s20, 1
      %p80 = por %p78, %p79
      %p81 = scmp.ne.s32.totalorder %s72, %s73
      %p82 = scmp.eq.s32.totalorder %s20, 0
      %p83 = por %p81, %p82
      %p84 = scmp.ne.s32.totalorder %s72, %s73
      %p85 = scmp.eq.s32.totalorder %s21, 1
      %p86 = por %p84, %p85
      %p88 = scmp.ne.s32.totalorder %s73, %s87
      %p89 = scmp.eq.s32.totalorder %s21, 0
      %p90 = por %p88, %p89
      %s92 = sadd.s32 %s91, 1
      %p95 = scmp.eq.s32.totalorder %s15, 1
      %p96 = scmp.ne.s32.totalorder %s91, %s93
      %p97 = scmp.eq.s32.totalorder %s15, 0
      %p98 = por %p96, %p97
      %p99 = scmp.ne.s32.totalorder %s91, %s93
      %p100 = scmp.eq.s32.totalorder %s20, 1
      %p101 = por %p99, %p100
      %p102 = scmp.ne.s32.totalorder %s93, %s94
      %p103 = scmp.eq.s32.totalorder %s20, 0
      %p104 = por %p102, %p103
      %p105 = scmp.ne.s32.totalorder %s93, %s94
      %p106 = scmp.eq.s32.totalorder %s21, 1
      %p107 = por %p105, %p106
      %p109 = scmp.ne.s32.totalorder %s94, %s108
      %p110 = scmp.eq.s32.totalorder %s21, 0
      %p111 = por %p109, %p110
      %s113 = sadd.s32 %s112, 1
      %p116 = scmp.eq.s32.totalorder %s15, 1
      %p117 = scmp.ne.s32.totalorder %s112, %s114
      %p118 = scmp.eq.s32.totalorder %s15, 0
      %p119 = por %p117, %p118
      %p120 = scmp.ne.s32.totalorder %s112, %s114
      %p121 = scmp.eq.s32.totalorder %s20, 1
      %p122 = por %p120, %p121
      %p123 = scmp.ne.s32.totalorder %s114, %s115
      %p124 = scmp.eq.s32.totalorder %s20, 0
      %p125 = por %p123, %p124
      %p126 = scmp.ne.s32.totalorder %s114, %s115
      %p127 = scmp.eq.s32.totalorder %s21, 1
      %p128 = por %p126, %p127
      %p130 = scmp.ne.s32.totalorder %s115, %s129
      %p131 = scmp.eq.s32.totalorder %s21, 0
      %p132 = por %p130, %p131
      %s134 = sadd.s32 %s133, 1
      %p137 = scmp.eq.s32.totalorder %s15, 1
      %p138 = scmp.ne.s32.totalorder %s133, %s135
      %p139 = scmp.eq.s32.totalorder %s15, 0
      %p140 = por %p138, %p139
      %p141 = scmp.ne.s32.totalorder %s133, %s135
      %p142 = scmp.eq.s32.totalorder %s20, 1
      %p143 = por %p141, %p142
      %p144 = scmp.ne.s32.totalorder %s135, %s136
      %p145 = scmp.eq.s32.totalorder %s20, 0
      %p146 = por %p144, %p145
      %p147 = scmp.ne.s32.totalorder %s135, %s136
      %p148 = scmp.eq.s32.totalorder %s21, 1
      %p149 = por %p147, %p148
      %p151 = scmp.ne.s32.totalorder %s136, %s150
      %p152 = scmp.eq.s32.totalorder %s21, 0
      %p153 = por %p151, %p152
      %s154 = ssub.s32 %s15, %s22
      %p155 = scmp.eq.s32.totalorder %s154, 0
      %s157 = sadd.s32 %s156, 1
      %s158 = scalar_select %p155, %s156, %s157
      %p161 = pneg %p155
      %p162 = scmp.eq.s32.totalorder %s15, 1
      %p163 = por %p161, %p162
      %p164 = scmp.ne.s32.totalorder %s156, %s159
      %p165 = scmp.eq.s32.totalorder %s15, 0
      %p166 = por %p164, %p165
      %p167 = scmp.ne.s32.totalorder %s156, %s159
      %p168 = scmp.eq.s32.totalorder %s20, 1
      %p169 = por %p167, %p168
      %p170 = scmp.ne.s32.totalorder %s159, %s160
      %p171 = scmp.eq.s32.totalorder %s20, 0
      %p172 = por %p170, %p171
      %p173 = scmp.ne.s32.totalorder %s159, %s160
      %p174 = scmp.eq.s32.totalorder %s21, 1
      %p175 = por %p173, %p174
      %p177 = scmp.ne.s32.totalorder %s160, %s176
      %p178 = scmp.eq.s32.totalorder %s21, 0
      %p179 = por %p177, %p178
      %p180 = scmp.le.s32.totalorder 1, %s15
      %p181 = scmp.lt.s32.totalorder %s15, 3
      %p182 = pnand %p180, %p181
      %p183 = pneg %p182
      // Predicated region
      $region9: #{tpu_custom_call.1} parent=5 // pred_check
        _
      $region10: #{tpu_custom_call.1} parent=5 // pred_check_branch
        %185 = sbr.rel (%p182) target = $region12
      $region11: #{tpu_custom_call.1} parent=5 // pred_region
        %s186 = ssub.s32 %s15, 1
        // Predicated region
        $region13: #{tpu_custom_call.1} parent=11 // pred_check
          %p187 = pneg %p62
        $region14: #{tpu_custom_call.1} parent=11 // pred_check_branch
          %189 = sbr.rel (%p187) target = $region16
        $region15: #{tpu_custom_call.1} parent=11 // pred_region
          _
        $region16: #{tpu_custom_call.1} parent=11 // pred_fallthru
          _
        // Predicated region
        $region17: #{tpu_custom_call.1} parent=11 // pred_check
          %p190 = pneg %p83
        $region18: #{tpu_custom_call.1} parent=11 // pred_check_branch
          %192 = sbr.rel (%p190) target = $region20
        $region19: #{tpu_custom_call.1} parent=11 // pred_region
          _
        $region20: #{tpu_custom_call.1} parent=11 // pred_fallthru
          _
        // Predicated region
        $region21: #{tpu_custom_call.1} parent=11 // pred_check
          %p193 = pneg %p104
        $region22: #{tpu_custom_call.1} parent=11 // pred_check_branch
          %195 = sbr.rel (%p193) target = $region24
        $region23: #{tpu_custom_call.1} parent=11 // pred_region
          _
        $region24: #{tpu_custom_call.1} parent=11 // pred_fallthru
          _
        // Predicated region
        $region25: #{tpu_custom_call.1} parent=11 // pred_check
          %p196 = pneg %p125
        $region26: #{tpu_custom_call.1} parent=11 // pred_check_branch
          %198 = sbr.rel (%p196) target = $region28
        $region27: #{tpu_custom_call.1} parent=11 // pred_region
          _
        $region28: #{tpu_custom_call.1} parent=11 // pred_fallthru
          _
        // Predicated region
        $region29: #{tpu_custom_call.1} parent=11 // pred_check
          %p199 = pneg %p146
        $region30: #{tpu_custom_call.1} parent=11 // pred_check_branch
          %201 = sbr.rel (%p199) target = $region32
        $region31: #{tpu_custom_call.1} parent=11 // pred_region
          _
        $region32: #{tpu_custom_call.1} parent=11 // pred_fallthru
          _
      $region12: #{tpu_custom_call.1} parent=5 // pred_fallthru
        _
      %p202 = scmp.lt.s32.totalorder %s15, 2
      // Predicated region
      $region33: #{tpu_custom_call.1} parent=5 // pred_check
        %p203 = pneg %p202
      $region34: #{tpu_custom_call.1} parent=5 // pred_check_branch
        %205 = sbr.rel (%p203) target = $region36
      $region35: #{tpu_custom_call.1} parent=5 // pred_region
        // Predicated region
        $region37: #{tpu_custom_call.1} parent=35 // pred_check
          %p206 = pneg %p35
        $region38: #{tpu_custom_call.1} parent=35 // pred_check_branch
          %208 = sbr.rel (%p206) target = $region40
        $region39: #{tpu_custom_call.1} parent=35 // pred_region
          %s209 = smul.u32 16, %s15
          %p210 = scmp.lt.s32.totalorder %s209, 31
          %s211 = scalar_select %p210, %s209, 31
          %s212 = smul.addr %s211, 8
          %s213 = scalar_lea.vmem %s0, %s212
          %s214 = smul.u32 16, %s15
        $region40: #{tpu_custom_call.1} parent=35 // pred_fallthru
          _
      $region36: #{tpu_custom_call.1} parent=5 // pred_fallthru
        _
      %p215 = scmp.le.s32.totalorder 1, %s15
      %p216 = scmp.lt.s32.totalorder %s15, 3
      %p217 = pnand %p215, %p216
      %p218 = pneg %p217
      // Predicated region
      $region41: #{tpu_custom_call.1} parent=5 // pred_check
        _
      $region42: #{tpu_custom_call.1} parent=5 // pred_check_branch
        %220 = sbr.rel (%p217) target = $region44
      $region43: #{tpu_custom_call.1} parent=5 // pred_region
        %s221 = ssub.s32 %s15, 1
        %s222 = smul.u32 16, %s20
        %p223 = scmp.lt.s32.totalorder %s222, 31
        %s224 = scalar_select %p223, %s222, 31
        %s225 = smul.addr %s224, 8
        %s226 = scalar_lea.vmem %s0, %s225
        %p227 = pneg %p41
        %p228 = pneg %p38
        %p229 = pneg %p62
        %p230 = pneg %p59
        %p231 = pneg %p83
        %p232 = pneg %p80
        %p233 = pneg %p104
        %p234 = pneg %p101
        %p235 = pneg %p125
        %p236 = pneg %p122
        %p237 = pneg %p146
        %p238 = pneg %p143
        %p239 = pneg %p172
        %p240 = pneg %p169
        %s241 = sand.u32 %s159, 1
        %s242 = scalar_lea.sflag [#allocation3], %s241
        %s243 = sand.u32 %s159, 1
        %s244 = smul.addr %s243, 8
        %s245 = scalar_lea.vmem [#allocation2], %s244
        %s246 = smul.u32 16, %s20
        %p247 = scmp.lt.s32.totalorder %s246, 31
        %s248 = scalar_select %p247, %s246, 31
        %s249 = smul.addr %s248, 8
        %s250 = scalar_lea.vmem %s0, %s249
        %s251 = smul.u32 16, %s20
        %v252 = vld [vmem:[%s1] sm:$0xff]
        %v253 = vld [vmem:[%s1 + $0x8] sm:$0xff]
        %v254 = vld [vmem:[%s1 + $0x10] sm:$0xff]
        %v255 = vld [vmem:[%s1 + $0x18] sm:$0xff]
        %v256 = vld [vmem:[%s250] sm:$0xff]
        %v257 = vld [vmem:[%s250 + $0x8] sm:$0xff]
        %v258 = vld [vmem:[%s250 + $0x10] sm:$0xff]
        %v259 = vld [vmem:[%s250 + $0x18] sm:$0xff]
        %v260 = vld [vmem:[%s250 + $0x20] sm:$0xff]
        %v261 = vld [vmem:[%s250 + $0x28] sm:$0xff]
        %v262 = vld [vmem:[%s250 + $0x30] sm:$0xff]
        %v263 = vld [vmem:[%s250 + $0x38] sm:$0xff]
        %v264 = vld [vmem:[%s250 + $0x40] sm:$0xff]
        %v265 = vld [vmem:[%s250 + $0x48] sm:$0xff]
        %v266 = vld [vmem:[%s250 + $0x50] sm:$0xff]
        %v267 = vld [vmem:[%s250 + $0x58] sm:$0xff]
        %v268 = vld [vmem:[%s250 + $0x60] sm:$0xff]
        %v269 = vld [vmem:[%s250 + $0x68] sm:$0xff]
        %v270 = vld [vmem:[%s250 + $0x70] sm:$0xff]
        %v271 = vld [vmem:[%s250 + $0x78] sm:$0xff]
        %v272 = vld [vmem:[%s5] sm:$0xff]
        %v273 = vld [vmem:[%s5 + $0x8] sm:$0xff]
        %v274 = vld [vmem:[%s5 + $0x10] sm:$0xff]
        %v275 = vld [vmem:[%s5 + $0x18] sm:$0xff]
        %277 = vset.pattern.permute.xlu0 0
        %278 = vperm.xlu0 %277, %v272
        %v279 = vpop.permute.xlu0 %278
        %282 = vset.pattern.permute.xlu0 0
        %283 = vperm.xlu0 %282, %v273
        %v284 = vpop.permute.xlu0 %283
        %287 = vset.pattern.permute.xlu0 0
        %288 = vperm.xlu0 %287, %v274
        %v289 = vpop.permute.xlu0 %288
        %292 = vset.pattern.permute.xlu0 0
        %293 = vperm.xlu0 %292, %v275
        %v294 = vpop.permute.xlu0 %293
        %vm296 = vcmask 130048
        %v298 = vsel %vm296, %v252, 0
        %v301 = vsel %vm296, %v253, 0
        %v304 = vsel %vm296, %v254, 0
        %v307 = vsel %vm296, %v255, 0
        %v310 = vsel %vm296, %v256, 0
        %v313 = vsel %vm296, %v257, 0
        %v316 = vsel %vm296, %v258, 0
        %v319 = vsel %vm296, %v259, 0
        %v322 = vsel %vm296, %v260, 0
        %v325 = vsel %vm296, %v261, 0
        %v328 = vsel %vm296, %v262, 0
        %v331 = vsel %vm296, %v263, 0
        %v334 = vsel %vm296, %v264, 0
        %v337 = vsel %vm296, %v265, 0
        %v340 = vsel %vm296, %v266, 0
        %v343 = vsel %vm296, %v267, 0
        %v346 = vsel %vm296, %v268, 0
        %v349 = vsel %vm296, %v269, 0
        %v352 = vsel %vm296, %v270, 0
        %v355 = vsel %vm296, %v271, 0
        %357 = vmatprep.subr.mxu0 0.0
        %358 = vmatpush1.xpose.msra.mxu0 %v355
        %359 = vmatprep.subr.mxu0 0.0
        %360 = vmatpush1.xpose.msra.mxu0 %v352
        %361 = vmatprep.subr.mxu0 0.0
        %362 = vmatpush1.xpose.msra.mxu0 %v349
        %363 = vmatprep.subr.mxu0 0.0
        %364 = vmatpush1.xpose.msra.mxu0 %v346
        %365 = vmatprep.subr.mxu0 0.0
        %366 = vmatpush1.xpose.msra.mxu0 %v343
        %367 = vmatprep.subr.mxu0 0.0
        %368 = vmatpush1.xpose.msra.mxu0 %v340
        %369 = vmatprep.subr.mxu0 0.0
        %370 = vmatpush1.xpose.msra.mxu0 %v337
        %371 = vmatprep.subr.mxu0 0.0
        %372 = vmatpush1.xpose.msra.mxu0 %v334
        %373 = vmatprep.subr.mxu0 0.0
        %374 = vmatpush1.xpose.msra.mxu0 %v331
        %375 = vmatprep.subr.mxu0 0.0
        %376 = vmatpush1.xpose.msra.mxu0 %v328
        %377 = vmatprep.subr.mxu0 0.0
        %378 = vmatpush1.xpose.msra.mxu0 %v325
        %379 = vmatprep.subr.mxu0 0.0
        %380 = vmatpush1.xpose.msra.mxu0 %v322
        %381 = vmatprep.subr.mxu0 0.0
        %382 = vmatpush1.xpose.msra.mxu0 %v319
        %383 = vmatprep.subr.mxu0 0.0
        %384 = vmatpush1.xpose.msra.mxu0 %v316
        %385 = vmatprep.subr.mxu0 0.0
        %386 = vmatpush1.xpose.msra.mxu0 %v313
        %387 = vmatprep.subr.mxu0 0.0
        %388 = vmatpush1.xpose.msra.mxu0 %v310
        %389 = vmatprep.subr.mxu0 0.0
        %390 = vmatpush2.xpose.msra.mxu0 0.0
        %391 = vmatprep.subr.mxu0 0.0
        %392 = vmatpush2.xpose.msra.mxu0 0.0
        %393 = vmatprep.subr.mxu0 0.0
        %394 = vmatpush2.xpose.msra.mxu0 0.0
        %395 = vmatprep.subr.mxu0 0.0
        %396 = vmatpush2.xpose.msra.mxu0 0.0
        %397 = vmatprep.subr.mxu0 0.0
        %398 = vmatpush2.xpose.msra.mxu0 0.0
        %399 = vmatprep.subr.mxu0 0.0
        %400 = vmatpush2.xpose.msra.mxu0 0.0
        %401 = vmatprep.subr.mxu0 0.0
        %402 = vmatpush2.xpose.msra.mxu0 0.0
        %403 = vmatprep.subr.mxu0 0.0
        %404 = vmatpush2.xpose.msra.mxu0 0.0
        %405 = vmatprep.subr.mxu0 0.0
        %406 = vmatpush2.xpose.msra.mxu0 0.0
        %407 = vmatprep.subr.mxu0 0.0
        %408 = vmatpush2.xpose.msra.mxu0 0.0
        %409 = vmatprep.subr.mxu0 0.0
        %410 = vmatpush2.xpose.msra.mxu0 0.0
        %411 = vmatprep.subr.mxu0 0.0
        %412 = vmatpush2.xpose.msra.mxu0 0.0
        %413 = vmatprep.subr.mxu0 0.0
        %414 = vmatpush2.xpose.msra.mxu0 0.0
        %415 = vmatprep.subr.mxu0 0.0
        %416 = vmatpush2.xpose.msra.mxu0 0.0
        %417 = vmatprep.subr.mxu0 0.0
        %418 = vmatpush2.xpose.msra.mxu0 0.0
        %419 = vmatprep.subr.mxu0 0.0
        %420 = vmatpush2.xpose.msra.mxu0 0.0
        %421 = vmatprep.mubr.f32.mxu0 0.0
        %422 = vmatmul.mubr.f32.gmra.mxu0 %v298
        %v423 = vpop.f32.mrf.mxu0
        %v424 = vadd.f32 %v279, %v423
        %v425 = vpop.f32.mrf.mxu0
        %426 = vmatprep.mubr.f32.mxu0 0.0
        %427 = vmatmul.mubr.f32.gmra.mxu0 %v301
        %v428 = vpop.f32.mrf.mxu0
        %v429 = vadd.f32 %v284, %v428
        %v430 = vpop.f32.mrf.mxu0
        %431 = vmatprep.mubr.f32.mxu0 0.0
        %432 = vmatmul.mubr.f32.gmra.mxu0 %v304
        %v433 = vpop.f32.mrf.mxu0
        %v434 = vadd.f32 %v289, %v433
        %v435 = vpop.f32.mrf.mxu0
        %436 = vmatprep.mubr.f32.mxu0 0.0
        %437 = vmatmul.mubr.f32.gmra.mxu0 %v307
        %v438 = vpop.f32.mrf.mxu0
        %v439 = vadd.f32 %v294, %v438
        %v440 = vpop.f32.mrf.mxu0
        %441 = vdwg.mxu0
        %v442 = vmax.f32 %v424, 0.0
        %v443 = vmax.f32 %v429, 0.0
        %v444 = vmax.f32 %v434, 0.0
        %v445 = vmax.f32 %v439, 0.0
        %v446 = vld [vmem:[%s2] sm:$0xff]
        %v447 = vld [vmem:[%s2 + $0x8] sm:$0xff]
        %v448 = vld [vmem:[%s2 + $0x10] sm:$0xff]
        %v449 = vld [vmem:[%s2 + $0x18] sm:$0xff]
        %v450 = vld [vmem:[%s5 + $0x20] sm:$0xff]
        %v451 = vld [vmem:[%s5 + $0x28] sm:$0xff]
        %v452 = vld [vmem:[%s5 + $0x30] sm:$0xff]
        %v453 = vld [vmem:[%s5 + $0x38] sm:$0xff]
        %455 = vset.pattern.permute.xlu0 0
        %456 = vperm.xlu0 %455, %v450
        %v457 = vpop.permute.xlu0 %456
        %460 = vset.pattern.permute.xlu0 0
        %461 = vperm.xlu0 %460, %v451
        %v462 = vpop.permute.xlu0 %461
        %465 = vset.pattern.permute.xlu0 0
        %466 = vperm.xlu0 %465, %v452
        %v467 = vpop.permute.xlu0 %466
        %470 = vset.pattern.permute.xlu0 0
        %471 = vperm.xlu0 %470, %v453
        %v472 = vpop.permute.xlu0 %471
        %vm474 = vcmask 261120
        %v476 = vsel %vm474, %v446, 0
        %v479 = vsel %vm474, %v447, 0
        %v482 = vsel %vm474, %v448, 0
        %v485 = vsel %vm474, %v449, 0
        %487 = vmatprep.subr.mxu0 0.0
        %488 = vmatpush1.msra.mxu0 0.0
        %489 = vmatprep.subr.mxu0 0.0
        %490 = vmatpush1.msra.mxu0 0.0
        %491 = vmatprep.subr.mxu0 0.0
        %492 = vmatpush1.msra.mxu0 0.0
        %493 = vmatprep.subr.mxu0 0.0
        %494 = vmatpush1.msra.mxu0 0.0
        %495 = vmatprep.subr.mxu0 0.0
        %496 = vmatpush1.msra.mxu0 0.0
        %497 = vmatprep.subr.mxu0 0.0
        %498 = vmatpush1.msra.mxu0 0.0
        %499 = vmatprep.subr.mxu0 0.0
        %500 = vmatpush1.msra.mxu0 0.0
        %501 = vmatprep.subr.mxu0 0.0
        %502 = vmatpush1.msra.mxu0 0.0
        %503 = vmatprep.subr.mxu0 0.0
        %504 = vmatpush1.msra.mxu0 0.0
        %505 = vmatprep.subr.mxu0 0.0
        %506 = vmatpush1.msra.mxu0 0.0
        %507 = vmatprep.subr.mxu0 0.0
        %508 = vmatpush1.msra.mxu0 0.0
        %509 = vmatprep.subr.mxu0 0.0
        %510 = vmatpush1.msra.mxu0 0.0
        %511 = vmatprep.subr.mxu0 0.0
        %512 = vmatpush1.msra.mxu0 %v445
        %513 = vmatprep.subr.mxu0 0.0
        %514 = vmatpush1.msra.mxu0 %v444
        %515 = vmatprep.subr.mxu0 0.0
        %516 = vmatpush1.msra.mxu0 %v443
        %517 = vmatprep.subr.mxu0 0.0
        %518 = vmatpush1.msra.mxu0 %v442
        %519 = vmatprep.subr.mxu0 0.0
        %520 = vmatpush2.msra.mxu0 0.0
        %521 = vmatprep.subr.mxu0 0.0
        %522 = vmatpush2.msra.mxu0 0.0
        %523 = vmatprep.subr.mxu0 0.0
        %524 = vmatpush2.msra.mxu0 0.0
        %525 = vmatprep.subr.mxu0 0.0
        %526 = vmatpush2.msra.mxu0 0.0
        %527 = vmatprep.subr.mxu0 0.0
        %528 = vmatpush2.msra.mxu0 0.0
        %529 = vmatprep.subr.mxu0 0.0
        %530 = vmatpush2.msra.mxu0 0.0
        %531 = vmatprep.subr.mxu0 0.0
        %532 = vmatpush2.msra.mxu0 0.0
        %533 = vmatprep.subr.mxu0 0.0
        %534 = vmatpush2.msra.mxu0 0.0
        %535 = vmatprep.subr.mxu0 0.0
        %536 = vmatpush2.msra.mxu0 0.0
        %537 = vmatprep.subr.mxu0 0.0
        %538 = vmatpush2.msra.mxu0 0.0
        %539 = vmatprep.subr.mxu0 0.0
        %540 = vmatpush2.msra.mxu0 0.0
        %541 = vmatprep.subr.mxu0 0.0
        %542 = vmatpush2.msra.mxu0 0.0
        %543 = vmatprep.subr.mxu0 0.0
        %544 = vmatpush2.msra.mxu0 0.0
        %545 = vmatprep.subr.mxu0 0.0
        %546 = vmatpush2.msra.mxu0 0.0
        %547 = vmatprep.subr.mxu0 0.0
        %548 = vmatpush2.msra.mxu0 0.0
        %549 = vmatprep.subr.mxu0 0.0
        %550 = vmatpush2.msra.mxu0 0.0
        %551 = vmatprep.mubr.f32.mxu0 0.0
        %552 = vmatmul.mubr.f32.gmra.mxu0 %v476
        %v553 = vpop.f32.mrf.mxu0
        %v554 = vadd.f32 %v457, %v553
        %v555 = vpop.f32.mrf.mxu0
        %556 = vmatprep.mubr.f32.mxu0 0.0
        %557 = vmatmul.mubr.f32.gmra.mxu0 %v479
        %v558 = vpop.f32.mrf.mxu0
        %v559 = vadd.f32 %v462, %v558
        %v560 = vpop.f32.mrf.mxu0
        %561 = vmatprep.mubr.f32.mxu0 0.0
        %562 = vmatmul.mubr.f32.gmra.mxu0 %v482
        %v563 = vpop.f32.mrf.mxu0
        %v564 = vadd.f32 %v467, %v563
        %v565 = vpop.f32.mrf.mxu0
        %566 = vmatprep.mubr.f32.mxu0 0.0
        %567 = vmatmul.mubr.f32.gmra.mxu0 %v485
        %v568 = vpop.f32.mrf.mxu0
        %v569 = vadd.f32 %v472, %v568
        %v570 = vpop.f32.mrf.mxu0
        %571 = vdwg.mxu0
        %v572 = vmax.f32 %v554, 0.0
        %v573 = vmax.f32 %v559, 0.0
        %v574 = vmax.f32 %v564, 0.0
        %v575 = vmax.f32 %v569, 0.0
        %v576 = vld [vmem:[%s3] sm:$0xff]
        %v577 = vld [vmem:[%s3 + $0x8] sm:$0xff]
        %v578 = vld [vmem:[%s3 + $0x10] sm:$0xff]
        %v579 = vld [vmem:[%s3 + $0x18] sm:$0xff]
        %v580 = vld [vmem:[%s5 + $0x40] sm:$0xff]
        %v581 = vld [vmem:[%s5 + $0x48] sm:$0xff]
        %v582 = vld [vmem:[%s5 + $0x50] sm:$0xff]
        %v583 = vld [vmem:[%s5 + $0x58] sm:$0xff]
        %585 = vset.pattern.permute.xlu0 0
        %586 = vperm.xlu0 %585, %v580
        %v587 = vpop.permute.xlu0 %586
        %590 = vset.pattern.permute.xlu0 0
        %591 = vperm.xlu0 %590, %v581
        %v592 = vpop.permute.xlu0 %591
        %595 = vset.pattern.permute.xlu0 0
        %596 = vperm.xlu0 %595, %v582
        %v597 = vpop.permute.xlu0 %596
        %600 = vset.pattern.permute.xlu0 0
        %601 = vperm.xlu0 %600, %v583
        %v602 = vpop.permute.xlu0 %601
        %v605 = vsel %vm474, %v576, 0
        %v608 = vsel %vm474, %v577, 0
        %v611 = vsel %vm474, %v578, 0
        %v614 = vsel %vm474, %v579, 0
        %616 = vmatprep.subr.mxu0 0.0
        %617 = vmatpush1.msra.mxu0 0.0
        %618 = vmatprep.subr.mxu0 0.0
        %619 = vmatpush1.msra.mxu0 0.0
        %620 = vmatprep.subr.mxu0 0.0
        %621 = vmatpush1.msra.mxu0 0.0
        %622 = vmatprep.subr.mxu0 0.0
        %623 = vmatpush1.msra.mxu0 0.0
        %624 = vmatprep.subr.mxu0 0.0
        %625 = vmatpush1.msra.mxu0 0.0
        %626 = vmatprep.subr.mxu0 0.0
        %627 = vmatpush1.msra.mxu0 0.0
        %628 = vmatprep.subr.mxu0 0.0
        %629 = vmatpush1.msra.mxu0 0.0
        %630 = vmatprep.subr.mxu0 0.0
        %631 = vmatpush1.msra.mxu0 0.0
        %632 = vmatprep.subr.mxu0 0.0
        %633 = vmatpush1.msra.mxu0 0.0
        %634 = vmatprep.subr.mxu0 0.0
        %635 = vmatpush1.msra.mxu0 0.0
        %636 = vmatprep.subr.mxu0 0.0
        %637 = vmatpush1.msra.mxu0 0.0
        %638 = vmatprep.subr.mxu0 0.0
        %639 = vmatpush1.msra.mxu0 0.0
        %640 = vmatprep.subr.mxu0 0.0
        %641 = vmatpush1.msra.mxu0 %v575
        %642 = vmatprep.subr.mxu0 0.0
        %643 = vmatpush1.msra.mxu0 %v574
        %644 = vmatprep.subr.mxu0 0.0
        %645 = vmatpush1.msra.mxu0 %v573
        %646 = vmatprep.subr.mxu0 0.0
        %647 = vmatpush1.msra.mxu0 %v572
        %648 = vmatprep.subr.mxu0 0.0
        %649 = vmatpush2.msra.mxu0 0.0
        %650 = vmatprep.subr.mxu0 0.0
        %651 = vmatpush2.msra.mxu0 0.0
        %652 = vmatprep.subr.mxu0 0.0
        %653 = vmatpush2.msra.mxu0 0.0
        %654 = vmatprep.subr.mxu0 0.0
        %655 = vmatpush2.msra.mxu0 0.0
        %656 = vmatprep.subr.mxu0 0.0
        %657 = vmatpush2.msra.mxu0 0.0
        %658 = vmatprep.subr.mxu0 0.0
        %659 = vmatpush2.msra.mxu0 0.0
        %660 = vmatprep.subr.mxu0 0.0
        %661 = vmatpush2.msra.mxu0 0.0
        %662 = vmatprep.subr.mxu0 0.0
        %663 = vmatpush2.msra.mxu0 0.0
        %664 = vmatprep.subr.mxu0 0.0
        %665 = vmatpush2.msra.mxu0 0.0
        %666 = vmatprep.subr.mxu0 0.0
        %667 = vmatpush2.msra.mxu0 0.0
        %668 = vmatprep.subr.mxu0 0.0
        %669 = vmatpush2.msra.mxu0 0.0
        %670 = vmatprep.subr.mxu0 0.0
        %671 = vmatpush2.msra.mxu0 0.0
        %672 = vmatprep.subr.mxu0 0.0
        %673 = vmatpush2.msra.mxu0 0.0
        %674 = vmatprep.subr.mxu0 0.0
        %675 = vmatpush2.msra.mxu0 0.0
        %676 = vmatprep.subr.mxu0 0.0
        %677 = vmatpush2.msra.mxu0 0.0
        %678 = vmatprep.subr.mxu0 0.0
        %679 = vmatpush2.msra.mxu0 0.0
        %680 = vmatprep.mubr.f32.mxu0 0.0
        %681 = vmatmul.mubr.f32.gmra.mxu0 %v605
        %v682 = vpop.f32.mrf.mxu0
        %v683 = vadd.f32 %v587, %v682
        %v684 = vpop.f32.mrf.mxu0
        %685 = vmatprep.mubr.f32.mxu0 0.0
        %686 = vmatmul.mubr.f32.gmra.mxu0 %v608
        %v687 = vpop.f32.mrf.mxu0
        %v688 = vadd.f32 %v592, %v687
        %v689 = vpop.f32.mrf.mxu0
        %690 = vmatprep.mubr.f32.mxu0 0.0
        %691 = vmatmul.mubr.f32.gmra.mxu0 %v611
        %v692 = vpop.f32.mrf.mxu0
        %v693 = vadd.f32 %v597, %v692
        %v694 = vpop.f32.mrf.mxu0
        %695 = vmatprep.mubr.f32.mxu0 0.0
        %696 = vmatmul.mubr.f32.gmra.mxu0 %v614
        %v697 = vpop.f32.mrf.mxu0
        %v698 = vadd.f32 %v602, %v697
        %v699 = vpop.f32.mrf.mxu0
        %700 = vdwg.mxu0
        %v701 = vmax.f32 %v683, 0.0
        %v702 = vmax.f32 %v688, 0.0
        %v703 = vmax.f32 %v693, 0.0
        %v704 = vmax.f32 %v698, 0.0
        %v705 = vld [vmem:[%s4] sm:$0x1f]
        %v706 = vld [vmem:[%s5 + $0x60] sm:$0x1f]
        %708 = vset.pattern.permute.xlu0 0
        %709 = vperm.xlu0 %708, %v706
        %v710 = vpop.permute.xlu0 %709
        %v713 = vsel %vm474, %v705, 0
        %715 = vmatprep.subr.mxu0 0.0
        %716 = vmatpush1.msra.mxu0 0.0
        %717 = vmatprep.subr.mxu0 0.0
        %718 = vmatpush1.msra.mxu0 0.0
        %719 = vmatprep.subr.mxu0 0.0
        %720 = vmatpush1.msra.mxu0 0.0
        %721 = vmatprep.subr.mxu0 0.0
        %722 = vmatpush1.msra.mxu0 0.0
        %723 = vmatprep.subr.mxu0 0.0
        %724 = vmatpush1.msra.mxu0 0.0
        %725 = vmatprep.subr.mxu0 0.0
        %726 = vmatpush1.msra.mxu0 0.0
        %727 = vmatprep.subr.mxu0 0.0
        %728 = vmatpush1.msra.mxu0 0.0
        %729 = vmatprep.subr.mxu0 0.0
        %730 = vmatpush1.msra.mxu0 0.0
        %731 = vmatprep.subr.mxu0 0.0
        %732 = vmatpush1.msra.mxu0 0.0
        %733 = vmatprep.subr.mxu0 0.0
        %734 = vmatpush1.msra.mxu0 0.0
        %735 = vmatprep.subr.mxu0 0.0
        %736 = vmatpush1.msra.mxu0 0.0
        %737 = vmatprep.subr.mxu0 0.0
        %738 = vmatpush1.msra.mxu0 0.0
        %739 = vmatprep.subr.mxu0 0.0
        %740 = vmatpush1.msra.mxu0 %v704
        %741 = vmatprep.subr.mxu0 0.0
        %742 = vmatpush1.msra.mxu0 %v703
        %743 = vmatprep.subr.mxu0 0.0
        %744 = vmatpush1.msra.mxu0 %v702
        %745 = vmatprep.subr.mxu0 0.0
        %746 = vmatpush1.msra.mxu0 %v701
        %747 = vmatprep.subr.mxu0 0.0
        %748 = vmatpush2.msra.mxu0 0.0
        %749 = vmatprep.subr.mxu0 0.0
        %750 = vmatpush2.msra.mxu0 0.0
        %751 = vmatprep.subr.mxu0 0.0
        %752 = vmatpush2.msra.mxu0 0.0
        %753 = vmatprep.subr.mxu0 0.0
        %754 = vmatpush2.msra.mxu0 0.0
        %755 = vmatprep.subr.mxu0 0.0
        %756 = vmatpush2.msra.mxu0 0.0
        %757 = vmatprep.subr.mxu0 0.0
        %758 = vmatpush2.msra.mxu0 0.0
        %759 = vmatprep.subr.mxu0 0.0
        %760 = vmatpush2.msra.mxu0 0.0
        %761 = vmatprep.subr.mxu0 0.0
        %762 = vmatpush2.msra.mxu0 0.0
        %763 = vmatprep.subr.mxu0 0.0
        %764 = vmatpush2.msra.mxu0 0.0
        %765 = vmatprep.subr.mxu0 0.0
        %766 = vmatpush2.msra.mxu0 0.0
        %767 = vmatprep.subr.mxu0 0.0
        %768 = vmatpush2.msra.mxu0 0.0
        %769 = vmatprep.subr.mxu0 0.0
        %770 = vmatpush2.msra.mxu0 0.0
        %771 = vmatprep.subr.mxu0 0.0
        %772 = vmatpush2.msra.mxu0 0.0
        %773 = vmatprep.subr.mxu0 0.0
        %774 = vmatpush2.msra.mxu0 0.0
        %775 = vmatprep.subr.mxu0 0.0
        %776 = vmatpush2.msra.mxu0 0.0
        %777 = vmatprep.subr.mxu0 0.0
        %778 = vmatpush2.msra.mxu0 0.0
        %779 = vmatprep.mubr.f32.mxu0 0.0
        %780 = vmatmul.mubr.f32.gmra.mxu0 %v713
        %v781 = vpop.f32.mrf.mxu0
        %v782 = vadd.f32 %v710, %v781
        %v783 = vpop.f32.mrf.mxu0
        %784 = vdwg.mxu0
        %v785 = vtanh.pop %v782
        %786 = vst [vmem:[%s245] sm:$0x1f] %v785
        %s787 = sand.u32 %s159, 1
        %s788 = scalar_lea.sflag [#allocation3], %s787
        %s789 = sand.u32 %s159, 1
        %s790 = smul.addr %s789, 8
        %s791 = scalar_lea.vmem [#allocation2], %s790
        // Predicated region
        $region45: #{tpu_custom_call.1} parent=43 // pred_check
          %p792 = pneg %p169
        $region46: #{tpu_custom_call.1} parent=43 // pred_check_branch
          %794 = sbr.rel (%p792) target = $region48
        $region47: #{tpu_custom_call.1} parent=43 // pred_region
          %s796 = ssub.s32 128, 128
          %797 = vsyncadd %s788, %s796
          %s798 = smul.addr %s20, 128
          %s799 = scalar_lea.hbm %s6, %s798
          %s801 = sshll.u32 %s791, 4
          %s802 = int_to_ptr.vmem [resolvable:$true] %s801
          %804 = dma.vmem_to_hbm [thread:$0]  %s802, 128, %s799, %s788
        $region48: #{tpu_custom_call.1} parent=43 // pred_fallthru
          _
      $region44: #{tpu_custom_call.1} parent=5 // pred_fallthru
        _
      %p805 = scmp.le.s32.totalorder 2, %s15
      // Predicated region
      $region49: #{tpu_custom_call.1} parent=5 // pred_check
        %p806 = pneg %p805
      $region50: #{tpu_custom_call.1} parent=5 // pred_check_branch
        %808 = sbr.rel (%p806) target = $region52
      $region51: #{tpu_custom_call.1} parent=5 // pred_region
        %s809 = ssub.s32 %s15, 2
        // Predicated region
        $region53: #{tpu_custom_call.1} parent=51 // pred_check
          %p810 = pneg %p175
        $region54: #{tpu_custom_call.1} parent=51 // pred_check_branch
          %812 = sbr.rel (%p810) target = $region56
        $region55: #{tpu_custom_call.1} parent=51 // pred_region
          %s813 = sand.u32 %s160, 1
          %s814 = scalar_lea.sflag [#allocation3], %s813
          %s815 = sand.u32 %s160, 1
          %s816 = smul.addr %s815, 8
          %s817 = scalar_lea.vmem [#allocation2], %s816
          %818 = dma.done %s814, 128
        $region56: #{tpu_custom_call.1} parent=51 // pred_fallthru
          _
      $region52: #{tpu_custom_call.1} parent=5 // pred_fallthru
        _
    $region6: #{tpu_custom_call.1} parent=1 // loop_footer
      %s19 = sadd.s32 1, %s15
    $region7: #{tpu_custom_call.1} parent=1 // loop_footer_branch
      %14 = sbr.rel target = $region3
    $region8: #{tpu_custom_call.1} parent=1 // loop_exit
      _
    %819 = vsyncpa [#allocation3], 1
    %s820 = scalar_lea.sflag [#allocation3], 1
    %821 = vsyncpa %s820, 1

</llo_original>
